<compile_context>
chip_gen: v6e
topology: v6e:2x2x1
jax: 0.10.0
libtpu: 0.0.40
codegen_flags: <defaults>
</compile_context>

<pallas_src>
import jax
import jax.numpy as jnp
from jax.experimental import pallas as pl
from jax.experimental.pallas import tpu as pltpu

EPS = 1e-5
PAD = 128  # lane-padded feature width for hidden / output dims


def _mlp_kernel(x_ref, w1_ref, w2_ref, w3_ref, w4_ref, vec_ref, out_ref):
    x = x_ref[...]
    inv_b = 1.0 / x.shape[0]

    def lin_bn_relu(h, w_ref, g, be):
        # Linear (bias cancelled by training-mode BN).
        z = jnp.dot(h, w_ref[...], preferred_element_type=jnp.float32)
        # Batch statistics via sublane reductions (VPU/XLU) — keeps the MXU
        # free for the real matmuls on the serialized latency chain.
        col_sum = jnp.sum(z, axis=0, keepdims=True)
        col_sum_sq = jnp.sum(z * z, axis=0, keepdims=True)
        mean = col_sum * inv_b
        # Biased (training-mode) variance; clamp fp cancellation.
        var = jnp.maximum(col_sum_sq * inv_b - mean * mean, 0.0)
        s = g * jax.lax.rsqrt(var + EPS)   # rsqrt -> EUP (free slot)
        t = be - mean * s
        # Fused BN affine + ReLU.
        return jnp.maximum(z * s + t, 0.0)

    # Packed small vectors: rows 0-2 gamma, 3-5 beta, 6 = b4 (row 7 unused).
    g1, g2, g3 = vec_ref[0:1, :], vec_ref[1:2, :], vec_ref[2:3, :]
    be1, be2, be3 = vec_ref[3:4, :], vec_ref[4:5, :], vec_ref[5:6, :]
    b4 = vec_ref[6:7, :]

    h = lin_bn_relu(x, w1_ref, g1, be1)
    h = lin_bn_relu(h, w2_ref, g2, be2)
    h = lin_bn_relu(h, w3_ref, g3, be3)
    out_ref[...] = jnp.dot(h, w4_ref[...], preferred_element_type=jnp.float32) + b4


def phone_classify_forward(x, params, n_classes):
    """x: (B, input_size) float32 (unpadded). Returns (B, n_classes) float32 logits."""
    B = x.shape[0]
    pad = params["w2"].shape[0]  # lane-padded hidden width (128)

    vmem = pl.BlockSpec(memory_space=pltpu.MemorySpace.VMEM)
    out_padded = pl.pallas_call(
        _mlp_kernel,
        out_shape=jax.ShapeDtypeStruct((B, pad), jnp.float32),
        in_specs=[vmem] * 6,
        out_specs=vmem,
    )(x, params["w1"], params["w2"], params["w3"], params["w4"], params["vec"])
    # Padded output columns are exactly zero; slice them off here.  (If the
    # consumer can take the padded (B, 128) slab, skip this to save a launch.)
    return out_padded[:, :n_classes]


def init_params(key, input_size, fc1_size, fc2_size, fc3_size, n_classes, pad=PAD):
    """PyTorch-style Linear init (uniform(+-1/sqrt(fan_in))); BN gamma=1, beta=0.
    w1 is (input_size, pad) so x can be passed unpadded; w2..w4 are (pad, pad).
    Linear biases for layers 1-3 are omitted (cancelled by training-mode BN)."""
    dims = [fc1_size, fc2_size, fc3_size, n_classes]
    assert max(dims) <= pad, "this small-model kernel assumes all hidden/output dims fit in one 128-lane tile"
    sizes = [(input_size, fc1_size), (fc1_size, fc2_size),
             (fc2_size, fc3_size), (fc3_size, n_classes)]
    keys = jax.random.split(key, 8)
    params = {}
    vec = jnp.zeros((8, pad), jnp.float32)
    for li, (fan_in, fan_out) in enumerate(sizes, start=1):
        bound = 1.0 / (fan_in ** 0.5)
        w = jax.random.uniform(keys[2 * li - 2], (fan_in, fan_out),
                               minval=-bound, maxval=bound, dtype=jnp.float32)
        rows = input_size if li == 1 else pad  # layer 1 rows stay unpadded
        wp = jnp.zeros((rows, pad), jnp.float32).at[:fan_in, :fan_out].set(w)
        params[f"w{li}"] = wp
        if li <= 3:
            # gamma = 1 on valid columns (rows 0-2); beta = 0 (rows 3-5, already zero).
            vec = vec.at[li - 1, :fan_out].set(1.0)
        else:
            b4 = jax.random.uniform(keys[2 * li - 1], (fan_out,),
                                    minval=-bound, maxval=bound, dtype=jnp.float32)
            vec = vec.at[6, :fan_out].set(b4)
    params["vec"] = vec
    return params


def _reference(x, params, dims):
    """Pure-JAX reference of the PyTorch forward (training-mode BatchNorm)."""
    input_size, fc1, fc2, fc3, n_classes = dims
    ws = [params["w1"][:input_size, :fc1],
          params["w2"][:fc1, :fc2],
          params["w3"][:fc2, :fc3],
          params["w4"][:fc3, :n_classes]]
    vec = params["vec"]
    h = x
    for li in range(3):
        z = h @ ws[li]
        mean = jnp.mean(z, axis=0, keepdims=True)
        var = jnp.var(z, axis=0, keepdims=True)  # biased, as in training BN
        g = vec[li, :z.shape[1]]
        be = vec[3 + li, :z.shape[1]]
        h = jnp.maximum((z - mean) * jax.lax.rsqrt(var + EPS) * g + be, 0.0)
    return h @ ws[3] + vec[6, :n_classes]


if __name__ == "__main__":
    B = 16
    input_size, fc1_size, fc2_size, fc3_size, n_classes = 32, 64, 48, 40, 10

    key = jax.random.PRNGKey(0)
    kx, kp = jax.random.split(key)
    x = jax.random.normal(kx, (B, input_size), dtype=jnp.float32)
    params = init_params(kp, input_size, fc1_size, fc2_size, fc3_size, n_classes)

    out = phone_classify_forward(x, params, n_classes)
    jax.block_until_ready(out)
    assert out.shape == (B, n_classes)
    assert bool(jnp.all(jnp.isfinite(out)))

    ref = _reference(x, params, (input_size, fc1_size, fc2_size, fc3_size, n_classes))
    assert bool(jnp.allclose(out, ref, rtol=1e-4, atol=1e-4)), "mismatch vs. pure-JAX reference"
    print("KERNEL_OK")
</pallas_src>

<mosaic_0001>
module attributes {stable_mosaic.version = 11 : i64} {
  func.func @_mlp_kernel(%arg0: memref<16x32xf32, #tpu.memory_space<vmem>>, %arg1: memref<32x128xf32, #tpu.memory_space<vmem>>, %arg2: memref<128x128xf32, #tpu.memory_space<vmem>>, %arg3: memref<128x128xf32, #tpu.memory_space<vmem>>, %arg4: memref<128x128xf32, #tpu.memory_space<vmem>>, %arg5: memref<8x128xf32, #tpu.memory_space<vmem>>, %arg6: memref<16x128xf32, #tpu.memory_space<vmem>>) attributes {dimension_semantics = [], scalar_prefetch = 0 : i64, scratch_operands = 0 : i64, tpu.core_type = #tpu.core_type<tc>} {
    %c0 = arith.constant 0 : index
    %c0_0 = arith.constant 0 : index
    %0 = vector.load %arg0[%c0, %c0_0] : memref<16x32xf32, #tpu.memory_space<vmem>>, vector<16x32xf32>
    %c0_1 = arith.constant 0 : index
    %c0_2 = arith.constant 0 : index
    %1 = vector.load %arg5[%c0_1, %c0_2] : memref<8x128xf32, #tpu.memory_space<vmem>>, vector<1x128xf32>
    %c1 = arith.constant 1 : index
    %c0_3 = arith.constant 0 : index
    %2 = vector.load %arg5[%c1, %c0_3] : memref<8x128xf32, #tpu.memory_space<vmem>>, vector<1x128xf32>
    %c2 = arith.constant 2 : index
    %c0_4 = arith.constant 0 : index
    %3 = vector.load %arg5[%c2, %c0_4] : memref<8x128xf32, #tpu.memory_space<vmem>>, vector<1x128xf32>
    %c3 = arith.constant 3 : index
    %c0_5 = arith.constant 0 : index
    %4 = vector.load %arg5[%c3, %c0_5] : memref<8x128xf32, #tpu.memory_space<vmem>>, vector<1x128xf32>
    %c4 = arith.constant 4 : index
    %c0_6 = arith.constant 0 : index
    %5 = vector.load %arg5[%c4, %c0_6] : memref<8x128xf32, #tpu.memory_space<vmem>>, vector<1x128xf32>
    %c5 = arith.constant 5 : index
    %c0_7 = arith.constant 0 : index
    %6 = vector.load %arg5[%c5, %c0_7] : memref<8x128xf32, #tpu.memory_space<vmem>>, vector<1x128xf32>
    %c6 = arith.constant 6 : index
    %c0_8 = arith.constant 0 : index
    %7 = vector.load %arg5[%c6, %c0_8] : memref<8x128xf32, #tpu.memory_space<vmem>>, vector<1x128xf32>
    %c0_9 = arith.constant 0 : index
    %c0_10 = arith.constant 0 : index
    %8 = vector.load %arg1[%c0_9, %c0_10] : memref<32x128xf32, #tpu.memory_space<vmem>>, vector<32x128xf32>
    %cst = arith.constant dense<0.000000e+00> : vector<16x128xf32>
    %9 = tpu.matmul %0, %8, %cst {dimension_numbers = #tpu.dot_dimension_numbers<[1], [0], [0], [1], [0, 0, 1, 1], [], []>} : vector<16x32xf32>, vector<32x128xf32>, vector<16x128xf32> -> vector<16x128xf32>
    %cst_11 = arith.constant dense<0.000000e+00> : vector<128xf32>
    %10 = vector.multi_reduction <add>, %9, %cst_11 [0] : vector<16x128xf32> to vector<128xf32>
    %11 = vector.shape_cast %10 : vector<128xf32> to vector<1x128xf32>
    %12 = arith.mulf %9, %9 : vector<16x128xf32>
    %cst_12 = arith.constant dense<0.000000e+00> : vector<128xf32>
    %13 = vector.multi_reduction <add>, %12, %cst_12 [0] : vector<16x128xf32> to vector<128xf32>
    %14 = vector.shape_cast %13 : vector<128xf32> to vector<1x128xf32>
    %cst_13 = arith.constant 6.250000e-02 : f32
    %15 = vector.broadcast %cst_13 : f32 to vector<1x128xf32>
    %16 = arith.mulf %11, %15 : vector<1x128xf32>
    %cst_14 = arith.constant 6.250000e-02 : f32
    %17 = vector.broadcast %cst_14 : f32 to vector<1x128xf32>
    %18 = arith.mulf %14, %17 : vector<1x128xf32>
    %19 = arith.mulf %16, %16 : vector<1x128xf32>
    %20 = arith.subf %18, %19 : vector<1x128xf32>
    %cst_15 = arith.constant 0.000000e+00 : f32
    %21 = vector.broadcast %cst_15 : f32 to vector<1x128xf32>
    %22 = arith.maximumf %20, %21 : vector<1x128xf32>
    %cst_16 = arith.constant 9.99999974E-6 : f32
    %23 = vector.broadcast %cst_16 : f32 to vector<1x128xf32>
    %24 = arith.addf %22, %23 : vector<1x128xf32>
    %25 = math.rsqrt %24 : vector<1x128xf32>
    %26 = arith.mulf %1, %25 : vector<1x128xf32>
    %27 = arith.mulf %16, %26 : vector<1x128xf32>
    %28 = arith.subf %4, %27 : vector<1x128xf32>
    %29 = vector.broadcast %26 : vector<1x128xf32> to vector<16x128xf32>
    %30 = arith.mulf %9, %29 : vector<16x128xf32>
    %31 = vector.broadcast %28 : vector<1x128xf32> to vector<16x128xf32>
    %32 = arith.addf %30, %31 : vector<16x128xf32>
    %cst_17 = arith.constant 0.000000e+00 : f32
    %33 = vector.broadcast %cst_17 : f32 to vector<16x128xf32>
    %34 = arith.maximumf %32, %33 : vector<16x128xf32>
    %c0_18 = arith.constant 0 : index
    %c0_19 = arith.constant 0 : index
    %35 = vector.load %arg2[%c0_18, %c0_19] : memref<128x128xf32, #tpu.memory_space<vmem>>, vector<128x128xf32>
    %cst_20 = arith.constant dense<0.000000e+00> : vector<16x128xf32>
    %36 = tpu.matmul %34, %35, %cst_20 {dimension_numbers = #tpu.dot_dimension_numbers<[1], [0], [0], [1], [0, 0, 1, 1], [], []>} : vector<16x128xf32>, vector<128x128xf32>, vector<16x128xf32> -> vector<16x128xf32>
    %cst_21 = arith.constant dense<0.000000e+00> : vector<128xf32>
    %37 = vector.multi_reduction <add>, %36, %cst_21 [0] : vector<16x128xf32> to vector<128xf32>
    %38 = vector.shape_cast %37 : vector<128xf32> to vector<1x128xf32>
    %39 = arith.mulf %36, %36 : vector<16x128xf32>
    %cst_22 = arith.constant dense<0.000000e+00> : vector<128xf32>
    %40 = vector.multi_reduction <add>, %39, %cst_22 [0] : vector<16x128xf32> to vector<128xf32>
    %41 = vector.shape_cast %40 : vector<128xf32> to vector<1x128xf32>
    %cst_23 = arith.constant 6.250000e-02 : f32
    %42 = vector.broadcast %cst_23 : f32 to vector<1x128xf32>
    %43 = arith.mulf %38, %42 : vector<1x128xf32>
    %cst_24 = arith.constant 6.250000e-02 : f32
    %44 = vector.broadcast %cst_24 : f32 to vector<1x128xf32>
    %45 = arith.mulf %41, %44 : vector<1x128xf32>
    %46 = arith.mulf %43, %43 : vector<1x128xf32>
    %47 = arith.subf %45, %46 : vector<1x128xf32>
    %cst_25 = arith.constant 0.000000e+00 : f32
    %48 = vector.broadcast %cst_25 : f32 to vector<1x128xf32>
    %49 = arith.maximumf %47, %48 : vector<1x128xf32>
    %cst_26 = arith.constant 9.99999974E-6 : f32
    %50 = vector.broadcast %cst_26 : f32 to vector<1x128xf32>
    %51 = arith.addf %49, %50 : vector<1x128xf32>
    %52 = math.rsqrt %51 : vector<1x128xf32>
    %53 = arith.mulf %2, %52 : vector<1x128xf32>
    %54 = arith.mulf %43, %53 : vector<1x128xf32>
    %55 = arith.subf %5, %54 : vector<1x128xf32>
    %56 = vector.broadcast %53 : vector<1x128xf32> to vector<16x128xf32>
    %57 = arith.mulf %36, %56 : vector<16x128xf32>
    %58 = vector.broadcast %55 : vector<1x128xf32> to vector<16x128xf32>
    %59 = arith.addf %57, %58 : vector<16x128xf32>
    %cst_27 = arith.constant 0.000000e+00 : f32
    %60 = vector.broadcast %cst_27 : f32 to vector<16x128xf32>
    %61 = arith.maximumf %59, %60 : vector<16x128xf32>
    %c0_28 = arith.constant 0 : index
    %c0_29 = arith.constant 0 : index
    %62 = vector.load %arg3[%c0_28, %c0_29] : memref<128x128xf32, #tpu.memory_space<vmem>>, vector<128x128xf32>
    %cst_30 = arith.constant dense<0.000000e+00> : vector<16x128xf32>
    %63 = tpu.matmul %61, %62, %cst_30 {dimension_numbers = #tpu.dot_dimension_numbers<[1], [0], [0], [1], [0, 0, 1, 1], [], []>} : vector<16x128xf32>, vector<128x128xf32>, vector<16x128xf32> -> vector<16x128xf32>
    %cst_31 = arith.constant dense<0.000000e+00> : vector<128xf32>
    %64 = vector.multi_reduction <add>, %63, %cst_31 [0] : vector<16x128xf32> to vector<128xf32>
    %65 = vector.shape_cast %64 : vector<128xf32> to vector<1x128xf32>
    %66 = arith.mulf %63, %63 : vector<16x128xf32>
    %cst_32 = arith.constant dense<0.000000e+00> : vector<128xf32>
    %67 = vector.multi_reduction <add>, %66, %cst_32 [0] : vector<16x128xf32> to vector<128xf32>
    %68 = vector.shape_cast %67 : vector<128xf32> to vector<1x128xf32>
    %cst_33 = arith.constant 6.250000e-02 : f32
    %69 = vector.broadcast %cst_33 : f32 to vector<1x128xf32>
    %70 = arith.mulf %65, %69 : vector<1x128xf32>
    %cst_34 = arith.constant 6.250000e-02 : f32
    %71 = vector.broadcast %cst_34 : f32 to vector<1x128xf32>
    %72 = arith.mulf %68, %71 : vector<1x128xf32>
    %73 = arith.mulf %70, %70 : vector<1x128xf32>
    %74 = arith.subf %72, %73 : vector<1x128xf32>
    %cst_35 = arith.constant 0.000000e+00 : f32
    %75 = vector.broadcast %cst_35 : f32 to vector<1x128xf32>
    %76 = arith.maximumf %74, %75 : vector<1x128xf32>
    %cst_36 = arith.constant 9.99999974E-6 : f32
    %77 = vector.broadcast %cst_36 : f32 to vector<1x128xf32>
    %78 = arith.addf %76, %77 : vector<1x128xf32>
    %79 = math.rsqrt %78 : vector<1x128xf32>
    %80 = arith.mulf %3, %79 : vector<1x128xf32>
    %81 = arith.mulf %70, %80 : vector<1x128xf32>
    %82 = arith.subf %6, %81 : vector<1x128xf32>
    %83 = vector.broadcast %80 : vector<1x128xf32> to vector<16x128xf32>
    %84 = arith.mulf %63, %83 : vector<16x128xf32>
    %85 = vector.broadcast %82 : vector<1x128xf32> to vector<16x128xf32>
    %86 = arith.addf %84, %85 : vector<16x128xf32>
    %cst_37 = arith.constant 0.000000e+00 : f32
    %87 = vector.broadcast %cst_37 : f32 to vector<16x128xf32>
    %88 = arith.maximumf %86, %87 : vector<16x128xf32>
    %c0_38 = arith.constant 0 : index
    %c0_39 = arith.constant 0 : index
    %89 = vector.load %arg4[%c0_38, %c0_39] : memref<128x128xf32, #tpu.memory_space<vmem>>, vector<128x128xf32>
    %cst_40 = arith.constant dense<0.000000e+00> : vector<16x128xf32>
    %90 = tpu.matmul %88, %89, %cst_40 {dimension_numbers = #tpu.dot_dimension_numbers<[1], [0], [0], [1], [0, 0, 1, 1], [], []>} : vector<16x128xf32>, vector<128x128xf32>, vector<16x128xf32> -> vector<16x128xf32>
    %91 = vector.broadcast %7 : vector<1x128xf32> to vector<16x128xf32>
    %92 = arith.addf %90, %91 : vector<16x128xf32>
    %c0_41 = arith.constant 0 : index
    %c0_42 = arith.constant 0 : index
    %93 = vector.load %arg6[%c0_41, %c0_42] : memref<16x128xf32, #tpu.memory_space<vmem>>, vector<16x128xf32>
    tpu.vector_store %arg6[%c0_41, %c0_42], %92 {strides = array<i32>} : memref<16x128xf32, #tpu.memory_space<vmem>>, vector<16x128xf32>,
    return
  }
}

</mosaic_0001>

<llo_original>
// kernel: tpu_custom_call.1
$region0: #{tpu_custom_call.1}
  #allocation0 [shape = 'u32[]', space=smem, size = 0x4, offset = 0x4, fixed_abs, tag = 'smem constant byte address 0x4 - core index']
  #allocation1 [shape = 'u32[144,128]{1,0:T(1,128)}', space=vmem, size = 0x12000, scoped, tag = 'internal scratch']
  %s0 = inlined_call_operand.hbm [shape: f32[16,32], index: 0, kind: input, shape index: {}]
  %s1 = inlined_call_operand.hbm [shape: f32[32,128], index: 1, kind: input, shape index: {}]
  %s2 = inlined_call_operand.hbm [shape: f32[128,128], index: 2, kind: input, shape index: {}]
  %s3 = inlined_call_operand.hbm [shape: f32[128,128], index: 3, kind: input, shape index: {}]
  %s4 = inlined_call_operand.hbm [shape: f32[128,128], index: 4, kind: input, shape index: {}]
  %s5 = inlined_call_operand.vmem [shape: f32[8,128], index: 5, kind: input, shape index: {}]
  %s6 = inlined_call_operand.hbm [shape: f32[16,128], index: 6, kind: output, shape index: {}]
  %s7 = sld [smem:[#allocation0]]
  $region54: #{tpu_custom_call.1} parent=0
    _
  %s9 = ssub.s32 1, %s7
  %s10 = scalar_select 0, %s9, %s7
  $region1: #{tpu_custom_call.1} parent=0
    #allocation2 [shape = 'u8[8192]{0}', space=vmem, size = 0x2000, scoped, tag = 'input window, operand 0, single buffered']
    #allocation3 [shape = 's32[1]{0}', space=sflag, size = 0x4, scoped, tag = 'scoped memory for tpu_custom_call.1']
    #allocation4 [shape = 's32[1]{0}', space=sflag, size = 0x4, scoped, tag = 'scoped memory for tpu_custom_call.1']
    #allocation5 [shape = 'u8[16384]{0}', space=vmem, size = 0x4000, scoped, tag = 'input window, operand 1, single buffered']
    #allocation6 [shape = 's32[1]{0}', space=sflag, size = 0x4, scoped, tag = 'scoped memory for tpu_custom_call.1']
    #allocation7 [shape = 'u8[65536]{0}', space=vmem, size = 0x10000, scoped, tag = 'input window, operand 2, single buffered']
    #allocation8 [shape = 'u8[65536]{0}', space=vmem, size = 0x10000, scoped, tag = 'input window, operand 3, single buffered']
    #allocation9 [shape = 's32[1]{0}', space=sflag, size = 0x4, scoped, tag = 'scoped memory for tpu_custom_call.1']
    #allocation10 [shape = 'u8[65536]{0}', space=vmem, size = 0x10000, scoped, tag = 'input window, operand 4, single buffered']
    #allocation11 [shape = 'u8[8192]{0}', space=vmem, size = 0x2000, scoped, tag = 'output window, operand 0, single buffered']
    %11 = vsyncpa [#allocation3], 0
    %12 = vsyncpa [#allocation6], 0
    %13 = vsyncpa [#allocation9], 0
    %14 = vsyncpa [#allocation4], 0
    // Predicated region
    $region2: #{tpu_custom_call.1} parent=1 // pred_check
      _
    $region3: #{tpu_custom_call.1} parent=1 // pred_check_branch
      %16 = sbr.rel (0) target = $region5
    $region4: #{tpu_custom_call.1} parent=1 // pred_region
      %s18 = ssub.s32 256, 256
      %19 = vsyncadd [#allocation3], %s18
      %s20 = sshll.u32 [#allocation2], 4
      %s21 = int_to_ptr.vmem [resolvable:$true] %s20
      %26 = dma.hbm_to_vmem [thread:$0]  %s0, 256, %s21, [#allocation3], 128, 128, 8
    $region5: #{tpu_custom_call.1} parent=1 // pred_fallthru
      _
    // Predicated region
    $region6: #{tpu_custom_call.1} parent=1 // pred_check
      _
    $region7: #{tpu_custom_call.1} parent=1 // pred_check_branch
      %28 = sbr.rel (0) target = $region9
    $region8: #{tpu_custom_call.1} parent=1 // pred_region
      %s30 = ssub.s32 512, 512
      %31 = vsyncadd [#allocation6], %s30
      %s32 = sshll.u32 [#allocation5], 4
      %s33 = int_to_ptr.vmem [resolvable:$true] %s32
      %38 = dma.hbm_to_vmem [thread:$0]  %s1, 512, %s33, [#allocation6], 128, 128, 8
    $region9: #{tpu_custom_call.1} parent=1 // pred_fallthru
      _
    // Predicated region
    $region10: #{tpu_custom_call.1} parent=1 // pred_check
      _
    $region11: #{tpu_custom_call.1} parent=1 // pred_check_branch
      %40 = sbr.rel (0) target = $region13
    $region12: #{tpu_custom_call.1} parent=1 // pred_region
      %s42 = ssub.s32 2048, 2048
      %43 = vsyncadd [#allocation6], %s42
      %s44 = sshll.u32 [#allocation7], 4
      %s45 = int_to_ptr.vmem [resolvable:$true] %s44
      %50 = dma.hbm_to_vmem [thread:$0]  %s2, 2048, %s45, [#allocation6], 128, 128, 8
    $region13: #{tpu_custom_call.1} parent=1 // pred_fallthru
      _
    // Predicated region
    $region14: #{tpu_custom_call.1} parent=1 // pred_check
      _
    $region15: #{tpu_custom_call.1} parent=1 // pred_check_branch
      %52 = sbr.rel (0) target = $region17
    $region16: #{tpu_custom_call.1} parent=1 // pred_region
      %s54 = ssub.s32 2048, 2048
      %55 = vsyncadd [#allocation9], %s54
      %s56 = sshll.u32 [#allocation8], 4
      %s57 = int_to_ptr.vmem [resolvable:$true] %s56
      %62 = dma.hbm_to_vmem [thread:$0]  %s3, 2048, %s57, [#allocation9], 128, 128, 8
    $region17: #{tpu_custom_call.1} parent=1 // pred_fallthru
      _
    // Predicated region
    $region18: #{tpu_custom_call.1} parent=1 // pred_check
      _
    $region19: #{tpu_custom_call.1} parent=1 // pred_check_branch
      %64 = sbr.rel (0) target = $region21
    $region20: #{tpu_custom_call.1} parent=1 // pred_region
      %s66 = ssub.s32 2048, 2048
      %67 = vsyncadd [#allocation9], %s66
      %s68 = sshll.u32 [#allocation10], 4
      %s69 = int_to_ptr.vmem [resolvable:$true] %s68
      %74 = dma.hbm_to_vmem [thread:$0]  %s4, 2048, %s69, [#allocation9], 128, 128, 8
    $region21: #{tpu_custom_call.1} parent=1 // pred_fallthru
      _
    // Predicated region
    $region22: #{tpu_custom_call.1} parent=1 // pred_check
      _
    $region23: #{tpu_custom_call.1} parent=1 // pred_check_branch
      %76 = sbr.rel (0) target = $region25
    $region24: #{tpu_custom_call.1} parent=1 // pred_region
      _
    $region25: #{tpu_custom_call.1} parent=1 // pred_fallthru
      _
    // Predicated region
    $region26: #{tpu_custom_call.1} parent=1 // pred_check
      _
    $region27: #{tpu_custom_call.1} parent=1 // pred_check_branch
      %78 = sbr.rel (0) target = $region29
    $region28: #{tpu_custom_call.1} parent=1 // pred_region
      %79 = dma.done [#allocation3], 256
    $region29: #{tpu_custom_call.1} parent=1 // pred_fallthru
      _
    // Predicated region
    $region30: #{tpu_custom_call.1} parent=1 // pred_check
      _
    $region31: #{tpu_custom_call.1} parent=1 // pred_check_branch
      %81 = sbr.rel (0) target = $region33
    $region32: #{tpu_custom_call.1} parent=1 // pred_region
      %82 = dma.done [#allocation6], 512
    $region33: #{tpu_custom_call.1} parent=1 // pred_fallthru
      _
    // Predicated region
    $region34: #{tpu_custom_call.1} parent=1 // pred_check
      _
    $region35: #{tpu_custom_call.1} parent=1 // pred_check_branch
      %84 = sbr.rel (0) target = $region37
    $region36: #{tpu_custom_call.1} parent=1 // pred_region
      %85 = dma.done [#allocation6], 2048
    $region37: #{tpu_custom_call.1} parent=1 // pred_fallthru
      _
    // Predicated region
    $region38: #{tpu_custom_call.1} parent=1 // pred_check
      _
    $region39: #{tpu_custom_call.1} parent=1 // pred_check_branch
      %87 = sbr.rel (0) target = $region41
    $region40: #{tpu_custom_call.1} parent=1 // pred_region
      %88 = dma.done [#allocation9], 2048
    $region41: #{tpu_custom_call.1} parent=1 // pred_fallthru
      _
    // Predicated region
    $region42: #{tpu_custom_call.1} parent=1 // pred_check
      _
    $region43: #{tpu_custom_call.1} parent=1 // pred_check_branch
      %90 = sbr.rel (0) target = $region45
    $region44: #{tpu_custom_call.1} parent=1 // pred_region
      %91 = dma.done [#allocation9], 2048
    $region45: #{tpu_custom_call.1} parent=1 // pred_fallthru
      _
    %v92 = vld [vmem:[#allocation2] sm:$0xff]
    %v93 = vld [vmem:[#allocation2 + $0x8] sm:$0xff]
    %v94 = vld [vmem:[%s5] sm:$0x1]
    %v95 = vld [vmem:[%s5 + $0x1] sm:$0x1]
    %v96 = vld [vmem:[%s5 + $0x2] sm:$0x1]
    %v97 = vld [vmem:[%s5 + $0x3] sm:$0x1]
    %v98 = vld [vmem:[%s5 + $0x4] sm:$0x1]
    %v99 = vld [vmem:[%s5 + $0x5] sm:$0x1]
    %v100 = vld [vmem:[%s5 + $0x6] sm:$0x1]
    %v101 = vld [vmem:[#allocation5] sm:$0xff]
    %v102 = vld [vmem:[#allocation5 + $0x8] sm:$0xff]
    %v103 = vld [vmem:[#allocation5 + $0x10] sm:$0xff]
    %v104 = vld [vmem:[#allocation5 + $0x18] sm:$0xff]
    %vm105 = vcmask 261120
    %v107 = vsel %vm105, %v92, 0
    %v110 = vsel %vm105, %v93, 0
    %112 = vmatprep.subr.mxu0 0.0
    %113 = vmatpush1.msra.mxu0 0.0
    %114 = vmatprep.subr.mxu0 0.0
    %115 = vmatpush1.msra.mxu0 0.0
    %116 = vmatprep.subr.mxu0 0.0
    %117 = vmatpush1.msra.mxu0 0.0
    %118 = vmatprep.subr.mxu0 0.0
    %119 = vmatpush1.msra.mxu0 0.0
    %120 = vmatprep.subr.mxu0 0.0
    %121 = vmatpush1.msra.mxu0 0.0
    %122 = vmatprep.subr.mxu0 0.0
    %123 = vmatpush1.msra.mxu0 0.0
    %124 = vmatprep.subr.mxu0 0.0
    %125 = vmatpush1.msra.mxu0 0.0
    %126 = vmatprep.subr.mxu0 0.0
    %127 = vmatpush1.msra.mxu0 0.0
    %128 = vmatprep.subr.mxu0 0.0
    %129 = vmatpush1.msra.mxu0 0.0
    %130 = vmatprep.subr.mxu0 0.0
    %131 = vmatpush1.msra.mxu0 0.0
    %132 = vmatprep.subr.mxu0 0.0
    %133 = vmatpush1.msra.mxu0 0.0
    %134 = vmatprep.subr.mxu0 0.0
    %135 = vmatpush1.msra.mxu0 0.0
    %136 = vmatprep.subr.mxu0 0.0
    %137 = vmatpush1.msra.mxu0 %v104
    %138 = vmatprep.subr.mxu0 0.0
    %139 = vmatpush1.msra.mxu0 %v103
    %140 = vmatprep.subr.mxu0 0.0
    %141 = vmatpush1.msra.mxu0 %v102
    %142 = vmatprep.subr.mxu0 0.0
    %143 = vmatpush1.msra.mxu0 %v101
    %144 = vmatprep.subr.mxu0 0.0
    %145 = vmatpush2.msra.mxu0 0.0
    %146 = vmatprep.subr.mxu0 0.0
    %147 = vmatpush2.msra.mxu0 0.0
    %148 = vmatprep.subr.mxu0 0.0
    %149 = vmatpush2.msra.mxu0 0.0
    %150 = vmatprep.subr.mxu0 0.0
    %151 = vmatpush2.msra.mxu0 0.0
    %152 = vmatprep.subr.mxu0 0.0
    %153 = vmatpush2.msra.mxu0 0.0
    %154 = vmatprep.subr.mxu0 0.0
    %155 = vmatpush2.msra.mxu0 0.0
    %156 = vmatprep.subr.mxu0 0.0
    %157 = vmatpush2.msra.mxu0 0.0
    %158 = vmatprep.subr.mxu0 0.0
    %159 = vmatpush2.msra.mxu0 0.0
    %160 = vmatprep.subr.mxu0 0.0
    %161 = vmatpush2.msra.mxu0 0.0
    %162 = vmatprep.subr.mxu0 0.0
    %163 = vmatpush2.msra.mxu0 0.0
    %164 = vmatprep.subr.mxu0 0.0
    %165 = vmatpush2.msra.mxu0 0.0
    %166 = vmatprep.subr.mxu0 0.0
    %167 = vmatpush2.msra.mxu0 0.0
    %168 = vmatprep.subr.mxu0 0.0
    %169 = vmatpush2.msra.mxu0 0.0
    %170 = vmatprep.subr.mxu0 0.0
    %171 = vmatpush2.msra.mxu0 0.0
    %172 = vmatprep.subr.mxu0 0.0
    %173 = vmatpush2.msra.mxu0 0.0
    %174 = vmatprep.subr.mxu0 0.0
    %175 = vmatpush2.msra.mxu0 0.0
    %176 = vmatprep.mubr.f32.mxu0 0.0
    %177 = vmatmul.mubr.f32.gmra.mxu0 %v107
    %v178 = vpop.f32.mrf.mxu0
    %v179 = vadd.f32 0.0, %v178
    %v180 = vpop.f32.mrf.mxu0
    %181 = vmatprep.mubr.f32.mxu0 0.0
    %182 = vmatmul.mubr.f32.gmra.mxu0 %v110
    %v183 = vpop.f32.mrf.mxu0
    %v184 = vadd.f32 0.0, %v183
    %v185 = vpop.f32.mrf.mxu0
    %186 = vdwg.mxu0
    %v187 = vadd.f32 %v179, %v184
    %v188 = vrot.slane %v187, 4
    %v189 = vadd.f32 %v187, %v188
    %v190 = vrot.slane %v189, 2
    %v191 = vadd.f32 %v189, %v190
    %v192 = vrot.slane %v191, 1
    %v193 = vadd.f32 %v191, %v192
    %v194 = vmul.f32 %v179, %v179
    %v195 = vmul.f32 %v184, %v184
    %v196 = vadd.f32 %v194, %v195
    %v197 = vrot.slane %v196, 4
    %v198 = vadd.f32 %v196, %v197
    %v199 = vrot.slane %v198, 2
    %v200 = vadd.f32 %v198, %v199
    %v201 = vrot.slane %v200, 1
    %v202 = vadd.f32 %v200, %v201
    %v203 = vmul.f32 %v193, 0.0625
    %v204 = vmul.f32 %v202, 0.0625
    %v205 = vmul.f32 %v203, %v203
    %v206 = vsub.f32 %v204, %v205
    %v207 = vmax.f32 %v206, 0.0
    %v208 = vadd.f32 %v207, 1e-05
    %v209 = vrsqrt.pop %v208
    %v210 = vmul.f32 %v94, %v209
    %v211 = vmul.f32 %v203, %v210
    %v212 = vsub.f32 %v97, %v211
    %v213 = vlaneseq
    %v214 = vshrl.u32 %v213, 7
    %v215 = vsub.s32 0, %v214
    %v216 = vrot.slane %v210, %v215
    %v217 = vmul.f32 %v179, %v216
    %v218 = vmul.f32 %v184, %v216
    %v219 = vlaneseq
    %v220 = vshrl.u32 %v219, 7
    %v221 = vsub.s32 0, %v220
    %v222 = vrot.slane %v212, %v221
    %v223 = vadd.f32 %v217, %v222
    %v224 = vadd.f32 %v218, %v222
    %v225 = vmax.f32 %v223, 0.0
    %v226 = vmax.f32 %v224, 0.0
    %v227 = vld [vmem:[#allocation7] sm:$0xff]
    %v228 = vld [vmem:[#allocation7 + $0x8] sm:$0xff]
    %v229 = vld [vmem:[#allocation7 + $0x10] sm:$0xff]
    %v230 = vld [vmem:[#allocation7 + $0x18] sm:$0xff]
    %v231 = vld [vmem:[#allocation7 + $0x20] sm:$0xff]
    %v232 = vld [vmem:[#allocation7 + $0x28] sm:$0xff]
    %v233 = vld [vmem:[#allocation7 + $0x30] sm:$0xff]
    %v234 = vld [vmem:[#allocation7 + $0x38] sm:$0xff]
    %v235 = vld [vmem:[#allocation7 + $0x40] sm:$0xff]
    %v236 = vld [vmem:[#allocation7 + $0x48] sm:$0xff]
    %v237 = vld [vmem:[#allocation7 + $0x50] sm:$0xff]
    %v238 = vld [vmem:[#allocation7 + $0x58] sm:$0xff]
    %v239 = vld [vmem:[#allocation7 + $0x60] sm:$0xff]
    %v240 = vld [vmem:[#allocation7 + $0x68] sm:$0xff]
    %v241 = vld [vmem:[#allocation7 + $0x70] sm:$0xff]
    %v242 = vld [vmem:[#allocation7 + $0x78] sm:$0xff]
    %243 = vmatprep.subr.mxu0 0.0
    %244 = vmatpush1.msra.mxu0 %v242
    %245 = vmatprep.subr.mxu0 0.0
    %246 = vmatpush1.msra.mxu0 %v241
    %247 = vmatprep.subr.mxu0 0.0
    %248 = vmatpush1.msra.mxu0 %v240
    %249 = vmatprep.subr.mxu0 0.0
    %250 = vmatpush1.msra.mxu0 %v239
    %251 = vmatprep.subr.mxu0 0.0
    %252 = vmatpush1.msra.mxu0 %v238
    %253 = vmatprep.subr.mxu0 0.0
    %254 = vmatpush1.msra.mxu0 %v237
    %255 = vmatprep.subr.mxu0 0.0
    %256 = vmatpush1.msra.mxu0 %v236
    %257 = vmatprep.subr.mxu0 0.0
    %258 = vmatpush1.msra.mxu0 %v235
    %259 = vmatprep.subr.mxu0 0.0
    %260 = vmatpush1.msra.mxu0 %v234
    %261 = vmatprep.subr.mxu0 0.0
    %262 = vmatpush1.msra.mxu0 %v233
    %263 = vmatprep.subr.mxu0 0.0
    %264 = vmatpush1.msra.mxu0 %v232
    %265 = vmatprep.subr.mxu0 0.0
    %266 = vmatpush1.msra.mxu0 %v231
    %267 = vmatprep.subr.mxu0 0.0
    %268 = vmatpush1.msra.mxu0 %v230
    %269 = vmatprep.subr.mxu0 0.0
    %270 = vmatpush1.msra.mxu0 %v229
    %271 = vmatprep.subr.mxu0 0.0
    %272 = vmatpush1.msra.mxu0 %v228
    %273 = vmatprep.subr.mxu0 0.0
    %274 = vmatpush1.msra.mxu0 %v227
    %275 = vmatprep.subr.mxu0 0.0
    %276 = vmatpush2.msra.mxu0 0.0
    %277 = vmatprep.subr.mxu0 0.0
    %278 = vmatpush2.msra.mxu0 0.0
    %279 = vmatprep.subr.mxu0 0.0
    %280 = vmatpush2.msra.mxu0 0.0
    %281 = vmatprep.subr.mxu0 0.0
    %282 = vmatpush2.msra.mxu0 0.0
    %283 = vmatprep.subr.mxu0 0.0
    %284 = vmatpush2.msra.mxu0 0.0
    %285 = vmatprep.subr.mxu0 0.0
    %286 = vmatpush2.msra.mxu0 0.0
    %287 = vmatprep.subr.mxu0 0.0
    %288 = vmatpush2.msra.mxu0 0.0
    %289 = vmatprep.subr.mxu0 0.0
    %290 = vmatpush2.msra.mxu0 0.0
    %291 = vmatprep.subr.mxu0 0.0
    %292 = vmatpush2.msra.mxu0 0.0
    %293 = vmatprep.subr.mxu0 0.0
    %294 = vmatpush2.msra.mxu0 0.0
    %295 = vmatprep.subr.mxu0 0.0
    %296 = vmatpush2.msra.mxu0 0.0
    %297 = vmatprep.subr.mxu0 0.0
    %298 = vmatpush2.msra.mxu0 0.0
    %299 = vmatprep.subr.mxu0 0.0
    %300 = vmatpush2.msra.mxu0 0.0
    %301 = vmatprep.subr.mxu0 0.0
    %302 = vmatpush2.msra.mxu0 0.0
    %303 = vmatprep.subr.mxu0 0.0
    %304 = vmatpush2.msra.mxu0 0.0
    %305 = vmatprep.subr.mxu0 0.0
    %306 = vmatpush2.msra.mxu0 0.0
    %307 = vmatprep.mubr.f32.mxu0 0.0
    %308 = vmatmul.mubr.f32.gmra.mxu0 %v225
    %v309 = vpop.f32.mrf.mxu0
    %v310 = vadd.f32 0.0, %v309
    %v311 = vpop.f32.mrf.mxu0
    %312 = vmatprep.mubr.f32.mxu0 0.0
    %313 = vmatmul.mubr.f32.gmra.mxu0 %v226
    %v314 = vpop.f32.mrf.mxu0
    %v315 = vadd.f32 0.0, %v314
    %v316 = vpop.f32.mrf.mxu0
    %317 = vdwg.mxu0
    %v318 = vadd.f32 %v310, %v315
    %v319 = vrot.slane %v318, 4
    %v320 = vadd.f32 %v318, %v319
    %v321 = vrot.slane %v320, 2
    %v322 = vadd.f32 %v320, %v321
    %v323 = vrot.slane %v322, 1
    %v324 = vadd.f32 %v322, %v323
    %v325 = vmul.f32 %v310, %v310
    %v326 = vmul.f32 %v315, %v315
    %v327 = vadd.f32 %v325, %v326
    %v328 = vrot.slane %v327, 4
    %v329 = vadd.f32 %v327, %v328
    %v330 = vrot.slane %v329, 2
    %v331 = vadd.f32 %v329, %v330
    %v332 = vrot.slane %v331, 1
    %v333 = vadd.f32 %v331, %v332
    %v334 = vmul.f32 %v324, 0.0625
    %v335 = vmul.f32 %v333, 0.0625
    %v336 = vmul.f32 %v334, %v334
    %v337 = vsub.f32 %v335, %v336
    %v338 = vmax.f32 %v337, 0.0
    %v339 = vadd.f32 %v338, 1e-05
    %v340 = vrsqrt.pop %v339
    %v341 = vmul.f32 %v95, %v340
    %v342 = vmul.f32 %v334, %v341
    %v343 = vsub.f32 %v98, %v342
    %v344 = vlaneseq
    %v345 = vshrl.u32 %v344, 7
    %v346 = vsub.s32 0, %v345
    %v347 = vrot.slane %v341, %v346
    %v348 = vmul.f32 %v310, %v347
    %v349 = vmul.f32 %v315, %v347
    %v350 = vlaneseq
    %v351 = vshrl.u32 %v350, 7
    %v352 = vsub.s32 0, %v351
    %v353 = vrot.slane %v343, %v352
    %v354 = vadd.f32 %v348, %v353
    %v355 = vadd.f32 %v349, %v353
    %v356 = vmax.f32 %v354, 0.0
    %v357 = vmax.f32 %v355, 0.0
    %v358 = vld [vmem:[#allocation8] sm:$0xff]
    %v359 = vld [vmem:[#allocation8 + $0x8] sm:$0xff]
    %v360 = vld [vmem:[#allocation8 + $0x10] sm:$0xff]
    %v361 = vld [vmem:[#allocation8 + $0x18] sm:$0xff]
    %v362 = vld [vmem:[#allocation8 + $0x20] sm:$0xff]
    %v363 = vld [vmem:[#allocation8 + $0x28] sm:$0xff]
    %v364 = vld [vmem:[#allocation8 + $0x30] sm:$0xff]
    %v365 = vld [vmem:[#allocation8 + $0x38] sm:$0xff]
    %v366 = vld [vmem:[#allocation8 + $0x40] sm:$0xff]
    %v367 = vld [vmem:[#allocation8 + $0x48] sm:$0xff]
    %v368 = vld [vmem:[#allocation8 + $0x50] sm:$0xff]
    %v369 = vld [vmem:[#allocation8 + $0x58] sm:$0xff]
    %v370 = vld [vmem:[#allocation8 + $0x60] sm:$0xff]
    %v371 = vld [vmem:[#allocation8 + $0x68] sm:$0xff]
    %v372 = vld [vmem:[#allocation8 + $0x70] sm:$0xff]
    %v373 = vld [vmem:[#allocation8 + $0x78] sm:$0xff]
    %374 = vmatprep.subr.mxu0 0.0
    %375 = vmatpush1.msra.mxu0 %v373
    %376 = vmatprep.subr.mxu0 0.0
    %377 = vmatpush1.msra.mxu0 %v372
    %378 = vmatprep.subr.mxu0 0.0
    %379 = vmatpush1.msra.mxu0 %v371
    %380 = vmatprep.subr.mxu0 0.0
    %381 = vmatpush1.msra.mxu0 %v370
    %382 = vmatprep.subr.mxu0 0.0
    %383 = vmatpush1.msra.mxu0 %v369
    %384 = vmatprep.subr.mxu0 0.0
    %385 = vmatpush1.msra.mxu0 %v368
    %386 = vmatprep.subr.mxu0 0.0
    %387 = vmatpush1.msra.mxu0 %v367
    %388 = vmatprep.subr.mxu0 0.0
    %389 = vmatpush1.msra.mxu0 %v366
    %390 = vmatprep.subr.mxu0 0.0
    %391 = vmatpush1.msra.mxu0 %v365
    %392 = vmatprep.subr.mxu0 0.0
    %393 = vmatpush1.msra.mxu0 %v364
    %394 = vmatprep.subr.mxu0 0.0
    %395 = vmatpush1.msra.mxu0 %v363
    %396 = vmatprep.subr.mxu0 0.0
    %397 = vmatpush1.msra.mxu0 %v362
    %398 = vmatprep.subr.mxu0 0.0
    %399 = vmatpush1.msra.mxu0 %v361
    %400 = vmatprep.subr.mxu0 0.0
    %401 = vmatpush1.msra.mxu0 %v360
    %402 = vmatprep.subr.mxu0 0.0
    %403 = vmatpush1.msra.mxu0 %v359
    %404 = vmatprep.subr.mxu0 0.0
    %405 = vmatpush1.msra.mxu0 %v358
    %406 = vmatprep.subr.mxu0 0.0
    %407 = vmatpush2.msra.mxu0 0.0
    %408 = vmatprep.subr.mxu0 0.0
    %409 = vmatpush2.msra.mxu0 0.0
    %410 = vmatprep.subr.mxu0 0.0
    %411 = vmatpush2.msra.mxu0 0.0
    %412 = vmatprep.subr.mxu0 0.0
    %413 = vmatpush2.msra.mxu0 0.0
    %414 = vmatprep.subr.mxu0 0.0
    %415 = vmatpush2.msra.mxu0 0.0
    %416 = vmatprep.subr.mxu0 0.0
    %417 = vmatpush2.msra.mxu0 0.0
    %418 = vmatprep.subr.mxu0 0.0
    %419 = vmatpush2.msra.mxu0 0.0
    %420 = vmatprep.subr.mxu0 0.0
    %421 = vmatpush2.msra.mxu0 0.0
    %422 = vmatprep.subr.mxu0 0.0
    %423 = vmatpush2.msra.mxu0 0.0
    %424 = vmatprep.subr.mxu0 0.0
    %425 = vmatpush2.msra.mxu0 0.0
    %426 = vmatprep.subr.mxu0 0.0
    %427 = vmatpush2.msra.mxu0 0.0
    %428 = vmatprep.subr.mxu0 0.0
    %429 = vmatpush2.msra.mxu0 0.0
    %430 = vmatprep.subr.mxu0 0.0
    %431 = vmatpush2.msra.mxu0 0.0
    %432 = vmatprep.subr.mxu0 0.0
    %433 = vmatpush2.msra.mxu0 0.0
    %434 = vmatprep.subr.mxu0 0.0
    %435 = vmatpush2.msra.mxu0 0.0
    %436 = vmatprep.subr.mxu0 0.0
    %437 = vmatpush2.msra.mxu0 0.0
    %438 = vmatprep.mubr.f32.mxu0 0.0
    %439 = vmatmul.mubr.f32.gmra.mxu0 %v356
    %v440 = vpop.f32.mrf.mxu0
    %v441 = vadd.f32 0.0, %v440
    %v442 = vpop.f32.mrf.mxu0
    %443 = vmatprep.mubr.f32.mxu0 0.0
    %444 = vmatmul.mubr.f32.gmra.mxu0 %v357
    %v445 = vpop.f32.mrf.mxu0
    %v446 = vadd.f32 0.0, %v445
    %v447 = vpop.f32.mrf.mxu0
    %448 = vdwg.mxu0
    %v449 = vadd.f32 %v441, %v446
    %v450 = vrot.slane %v449, 4
    %v451 = vadd.f32 %v449, %v450
    %v452 = vrot.slane %v451, 2
    %v453 = vadd.f32 %v451, %v452
    %v454 = vrot.slane %v453, 1
    %v455 = vadd.f32 %v453, %v454
    %v456 = vmul.f32 %v441, %v441
    %v457 = vmul.f32 %v446, %v446
    %v458 = vadd.f32 %v456, %v457
    %v459 = vrot.slane %v458, 4
    %v460 = vadd.f32 %v458, %v459
    %v461 = vrot.slane %v460, 2
    %v462 = vadd.f32 %v460, %v461
    %v463 = vrot.slane %v462, 1
    %v464 = vadd.f32 %v462, %v463
    %v465 = vmul.f32 %v455, 0.0625
    %v466 = vmul.f32 %v464, 0.0625
    %v467 = vmul.f32 %v465, %v465
    %v468 = vsub.f32 %v466, %v467
    %v469 = vmax.f32 %v468, 0.0
    %v470 = vadd.f32 %v469, 1e-05
    %v471 = vrsqrt.pop %v470
    %v472 = vmul.f32 %v96, %v471
    %v473 = vmul.f32 %v465, %v472
    %v474 = vsub.f32 %v99, %v473
    %v475 = vlaneseq
    %v476 = vshrl.u32 %v475, 7
    %v477 = vsub.s32 0, %v476
    %v478 = vrot.slane %v472, %v477
    %v479 = vmul.f32 %v441, %v478
    %v480 = vmul.f32 %v446, %v478
    %v481 = vlaneseq
    %v482 = vshrl.u32 %v481, 7
    %v483 = vsub.s32 0, %v482
    %v484 = vrot.slane %v474, %v483
    %v485 = vadd.f32 %v479, %v484
    %v486 = vadd.f32 %v480, %v484
    %v487 = vmax.f32 %v485, 0.0
    %v488 = vmax.f32 %v486, 0.0
    %v489 = vld [vmem:[#allocation10] sm:$0xff]
    %v490 = vld [vmem:[#allocation10 + $0x8] sm:$0xff]
    %v491 = vld [vmem:[#allocation10 + $0x10] sm:$0xff]
    %v492 = vld [vmem:[#allocation10 + $0x18] sm:$0xff]
    %v493 = vld [vmem:[#allocation10 + $0x20] sm:$0xff]
    %v494 = vld [vmem:[#allocation10 + $0x28] sm:$0xff]
    %v495 = vld [vmem:[#allocation10 + $0x30] sm:$0xff]
    %v496 = vld [vmem:[#allocation10 + $0x38] sm:$0xff]
    %v497 = vld [vmem:[#allocation10 + $0x40] sm:$0xff]
    %v498 = vld [vmem:[#allocation10 + $0x48] sm:$0xff]
    %v499 = vld [vmem:[#allocation10 + $0x50] sm:$0xff]
    %v500 = vld [vmem:[#allocation10 + $0x58] sm:$0xff]
    %v501 = vld [vmem:[#allocation10 + $0x60] sm:$0xff]
    %v502 = vld [vmem:[#allocation10 + $0x68] sm:$0xff]
    %v503 = vld [vmem:[#allocation10 + $0x70] sm:$0xff]
    %v504 = vld [vmem:[#allocation10 + $0x78] sm:$0xff]
    %v505 = vlaneseq
    %v506 = vshrl.u32 %v505, 7
    %v507 = vsub.s32 0, %v506
    %v508 = vrot.slane %v100, %v507
    %509 = vmatprep.subr.mxu0 0.0
    %510 = vmatpush1.msra.mxu0 %v504
    %511 = vmatprep.subr.mxu0 0.0
    %512 = vmatpush1.msra.mxu0 %v503
    %513 = vmatprep.subr.mxu0 0.0
    %514 = vmatpush1.msra.mxu0 %v502
    %515 = vmatprep.subr.mxu0 0.0
    %516 = vmatpush1.msra.mxu0 %v501
    %517 = vmatprep.subr.mxu0 0.0
    %518 = vmatpush1.msra.mxu0 %v500
    %519 = vmatprep.subr.mxu0 0.0
    %520 = vmatpush1.msra.mxu0 %v499
    %521 = vmatprep.subr.mxu0 0.0
    %522 = vmatpush1.msra.mxu0 %v498
    %523 = vmatprep.subr.mxu0 0.0
    %524 = vmatpush1.msra.mxu0 %v497
    %525 = vmatprep.subr.mxu0 0.0
    %526 = vmatpush1.msra.mxu0 %v496
    %527 = vmatprep.subr.mxu0 0.0
    %528 = vmatpush1.msra.mxu0 %v495
    %529 = vmatprep.subr.mxu0 0.0
    %530 = vmatpush1.msra.mxu0 %v494
    %531 = vmatprep.subr.mxu0 0.0
    %532 = vmatpush1.msra.mxu0 %v493
    %533 = vmatprep.subr.mxu0 0.0
    %534 = vmatpush1.msra.mxu0 %v492
    %535 = vmatprep.subr.mxu0 0.0
    %536 = vmatpush1.msra.mxu0 %v491
    %537 = vmatprep.subr.mxu0 0.0
    %538 = vmatpush1.msra.mxu0 %v490
    %539 = vmatprep.subr.mxu0 0.0
    %540 = vmatpush1.msra.mxu0 %v489
    %541 = vmatprep.subr.mxu0 0.0
    %542 = vmatpush2.msra.mxu0 0.0
    %543 = vmatprep.subr.mxu0 0.0
    %544 = vmatpush2.msra.mxu0 0.0
    %545 = vmatprep.subr.mxu0 0.0
    %546 = vmatpush2.msra.mxu0 0.0
    %547 = vmatprep.subr.mxu0 0.0
    %548 = vmatpush2.msra.mxu0 0.0
    %549 = vmatprep.subr.mxu0 0.0
    %550 = vmatpush2.msra.mxu0 0.0
    %551 = vmatprep.subr.mxu0 0.0
    %552 = vmatpush2.msra.mxu0 0.0
    %553 = vmatprep.subr.mxu0 0.0
    %554 = vmatpush2.msra.mxu0 0.0
    %555 = vmatprep.subr.mxu0 0.0
    %556 = vmatpush2.msra.mxu0 0.0
    %557 = vmatprep.subr.mxu0 0.0
    %558 = vmatpush2.msra.mxu0 0.0
    %559 = vmatprep.subr.mxu0 0.0
    %560 = vmatpush2.msra.mxu0 0.0
    %561 = vmatprep.subr.mxu0 0.0
    %562 = vmatpush2.msra.mxu0 0.0
    %563 = vmatprep.subr.mxu0 0.0
    %564 = vmatpush2.msra.mxu0 0.0
    %565 = vmatprep.subr.mxu0 0.0
    %566 = vmatpush2.msra.mxu0 0.0
    %567 = vmatprep.subr.mxu0 0.0
    %568 = vmatpush2.msra.mxu0 0.0
    %569 = vmatprep.subr.mxu0 0.0
    %570 = vmatpush2.msra.mxu0 0.0
    %571 = vmatprep.subr.mxu0 0.0
    %572 = vmatpush2.msra.mxu0 0.0
    %573 = vmatprep.mubr.f32.mxu0 0.0
    %574 = vmatmul.mubr.f32.gmra.mxu0 %v487
    %v575 = vpop.f32.mrf.mxu0
    %v576 = vadd.f32 %v508, %v575
    %v577 = vpop.f32.mrf.mxu0
    %578 = vmatprep.mubr.f32.mxu0 0.0
    %579 = vmatmul.mubr.f32.gmra.mxu0 %v488
    %v580 = vpop.f32.mrf.mxu0
    %v581 = vadd.f32 %v508, %v580
    %v582 = vpop.f32.mrf.mxu0
    %583 = vdwg.mxu0
    %584 = vst [vmem:[#allocation11] sm:$0xff] %v576
    %585 = vst [vmem:[#allocation11 + $0x8] sm:$0xff] %v581
    // Predicated region
    $region46: #{tpu_custom_call.1} parent=1 // pred_check
      _
    $region47: #{tpu_custom_call.1} parent=1 // pred_check_branch
      %587 = sbr.rel (0) target = $region49
    $region48: #{tpu_custom_call.1} parent=1 // pred_region
      %s589 = ssub.s32 256, 256
      %590 = vsyncadd [#allocation4], %s589
      %s591 = sshll.u32 [#allocation11], 4
      %s592 = int_to_ptr.vmem [resolvable:$true] %s591
      %597 = dma.vmem_to_hbm [thread:$0]  %s592, 256, %s6, [#allocation4], 128, 128, 8
    $region49: #{tpu_custom_call.1} parent=1 // pred_fallthru
      _
    // Predicated region
    $region50: #{tpu_custom_call.1} parent=1 // pred_check
      _
    $region51: #{tpu_custom_call.1} parent=1 // pred_check_branch
      %599 = sbr.rel (0) target = $region53
    $region52: #{tpu_custom_call.1} parent=1 // pred_region
      %600 = dma.done [#allocation4], 256
    $region53: #{tpu_custom_call.1} parent=1 // pred_fallthru
      _
    %601 = vsyncpa [#allocation3], 1
    %602 = vsyncpa [#allocation6], 1
    %603 = vsyncpa [#allocation9], 1
    %604 = vsyncpa [#allocation4], 1

</llo_original>
